<compile_context>
chip_gen: v6e
topology: v6e:2x2x1
jax: 0.10.0
libtpu: 0.0.40
codegen_flags: <defaults>
</compile_context>

<pallas_src>
import functools

import jax
import jax.numpy as jnp
from jax.experimental import pallas as pl
from jax.experimental.pallas import tpu as pltpu


# --------------------------------------------------------------------------
# Kernels
# --------------------------------------------------------------------------
def _bn_pad_kernel(scale_ref, shift_ref, halo_ref, x_ref, o_ref, *, pad, r_last):
    """One (batch, channel-block, output-row-block) grid step.

    scale_ref/shift_ref : (1, Cb) f32      per-channel BN scale / shift (= pad value)
    halo_ref            : (1, pad, W, Cb)  input rows [t*Hb - pad, t*Hb)
    x_ref               : (1, Hb,  W, Cb)  input rows [t*Hb, (t+1)*Hb)
    o_ref               : (1, Hb, Wo, Cb)  output rows [t*Hb, (t+1)*Hb)
    """
    t = pl.program_id(2)
    n_t = pl.num_programs(2)
    hb = o_ref.shape[1]
    W = x_ref.shape[2]
    cb = scale_ref.shape[-1]
    dt = o_ref.dtype

    scale = scale_ref[...]                       # (1, Cb)
    shift = shift_ref[...]                       # (1, Cb) == per-channel pad value

    def bn32(v):                                 # fused load -> scale -> shift (f32)
        return v.astype(jnp.float32) * scale + shift

    # Left / right pad columns (corners included): small broadcast stores.
    lr = jnp.broadcast_to(shift, (hb, pad, cb)).astype(dt)
    o_ref[0, :, 0:pad, :] = lr
    o_ref[0, :, pad + W:, :] = lr

    @pl.when(t < n_t - 1)
    def _full_block():
        # First `pad` rows: top border (t == 0) or interior rows from the halo.
        top = jnp.where(t == 0,
                        jnp.broadcast_to(shift, (pad, W, cb)),
                        bn32(halo_ref[0]))
        o_ref[0, 0:pad, pad:pad + W, :] = top.astype(dt)
        # Remaining rows: pure interior, one fused store at sublane offset `pad`.
        o_ref[0, pad:hb, pad:pad + W, :] = bn32(x_ref[0, 0:hb - pad]).astype(dt)

    @pl.when(t == n_t - 1)
    def _last_block():
        # Static layout of the last (possibly partial) row block:
        #   rows [0, top_h)             interior, sourced from the halo
        #   rows [pad, pad + mid_h)     interior, sourced from x
        #   rows [r_last - pad, r_last) bottom border
        #   rows [r_last, hb)           beyond the array -> never written back
        top_h = min(pad, r_last - pad)
        mid_h = max(r_last - 2 * pad, 0)
        if top_h > 0:
            o_ref[0, 0:top_h, pad:pad + W, :] = bn32(halo_ref[0, 0:top_h]).astype(dt)
        if mid_h > 0:
            o_ref[0, pad:pad + mid_h, pad:pad + W, :] = bn32(x_ref[0, 0:mid_h]).astype(dt)
        o_ref[0, r_last - pad:r_last, pad:pad + W, :] = (
            jnp.broadcast_to(shift, (pad, W, cb)).astype(dt))


def _bn_kernel(scale_ref, shift_ref, x_ref, o_ref):
    """pad_pixels == 0: plain eval-mode BN, single fused store."""
    o_ref[...] = (x_ref[...].astype(jnp.float32) * scale_ref[...]
                  + shift_ref[...]).astype(o_ref.dtype)


# --------------------------------------------------------------------------
# Block / VMEM selection
# --------------------------------------------------------------------------
def _vmem_budget_bytes():
    """~45% of this generation's VMEM (v7x: 64 MiB, v5e/v6e: 128 MiB)."""
    cap = None
    try:
        cap = getattr(pltpu.get_tpu_info(), "vmem_capacity_bytes", None)
    except Exception:
        cap = None
    if not cap:
        cap = 64 * 1024 * 1024          # conservative default (v7x per-TC)
    return int(0.45 * cap)


def _pick_blocks(H, W, C, pad, itemsize, budget):
    """Pick (row block, channel block): contiguous full-C blocks when possible,
    mid-size (~<=8 MiB incl. double buffering) row blocks."""
    Ho, Wo = H + 2 * pad, W + 2 * pad

    def step_bytes(hb, cb):
        # double-buffered x + halo + out blocks, plus f32 compute headroom
        return 2 * (hb * W + pad * W + hb * Wo) * cb * itemsize + hb * W * cb * 4

    hb_min = 2 * pad if pad > 0 else min(H, 8)

    # Channel block: keep full C whenever a minimal row block fits the budget
    # (full-C blocks -> fully contiguous HBM DMAs); else multiples of 128.
    if C <= 128 or step_bytes(hb_min, C) <= budget:
        cb = C
    else:
        cb = min(C, max(128, (budget // max(step_bytes(hb_min, 1), 1)) // 128 * 128))

    # Row block: mid-size steps give ~full HBM roofline while keeping plenty of
    # grid steps and VMEM headroom on every generation.
    target = min(budget, 8 * 1024 * 1024)
    per_row = 2 * (W + Wo) * cb * itemsize + W * cb * 4
    hb = min(H, max(hb_min, target // max(per_row, 1)))
    if pad > 0:
        hb = max(hb_min, (hb // pad) * pad)      # halo indexing needs pad | hb
    return int(hb), int(cb)


# --------------------------------------------------------------------------
# Wrappers
# --------------------------------------------------------------------------
def bn_and_pad_nhwc(x, weight, bias, running_mean, running_var, *,
                    eps=1e-5, pad_pixels=1, row_block=None):
    """Eval-mode BatchNorm2d + BN-shift border padding, channels-last.

    x: (N, H, W, C). Returns (N, H + 2p, W + 2p, C), same dtype as x.
    Keep activations NHWC end-to-end in a real pipeline: this op is purely
    HBM-bandwidth-bound, so layout transposes around it dominate wall time.
    """
    N, H, W, C = x.shape
    p = int(pad_pixels)
    Ho, Wo = H + 2 * p, W + 2 * p

    inv_std = 1.0 / jnp.sqrt(running_var.astype(jnp.float32) + eps)
    w32 = weight.astype(jnp.float32)
    scale = (w32 * inv_std).reshape(1, C)
    shift = (bias.astype(jnp.float32)
             - running_mean.astype(jnp.float32) * w32 * inv_std).reshape(1, C)

    itemsize = jnp.dtype(x.dtype).itemsize
    budget = _vmem_budget_bytes()
    hb, cb = _pick_blocks(H, W, C, p, itemsize, budget)
    if row_block is not None:
        hb = int(row_block)

    n_c = pl.cdiv(C, cb)
    cost = pl.CostEstimate(
        flops=2 * N * C * H * W, transcendentals=0,
        bytes_accessed=itemsize * N * C * (H * W + Ho * Wo) + 8 * C)

    if p == 0:
        n_t = pl.cdiv(H, hb)
        blk = 2 * hb * W * cb * itemsize
        vmem_limit = int(max(2 * blk + hb * W * cb * 4 + (2 << 20), 4 << 20))
        return pl.pallas_call(
            _bn_kernel,
            out_shape=jax.ShapeDtypeStruct((N, H, W, C), x.dtype),
            grid=(N, n_c, n_t),
            in_specs=[
                pl.BlockSpec((1, cb), lambda n, c, t: (0, c)),
                pl.BlockSpec((1, cb), lambda n, c, t: (0, c)),
                pl.BlockSpec((1, hb, W, cb), lambda n, c, t: (n, t, 0, c)),
            ],
            out_specs=pl.BlockSpec((1, hb, W, cb), lambda n, c, t: (n, t, 0, c)),
            compiler_params=pltpu.CompilerParams(
                dimension_semantics=("parallel", "parallel", "parallel"),
                vmem_limit_bytes=vmem_limit),
            cost_estimate=cost,
        )(scale, shift, x)

    if H < 2 * p:
        # TODO(synk): degenerate H < 2*pad_pixels (never hit by RepConv, pad=1).
        raise NotImplementedError("H must be >= 2 * pad_pixels")
    assert hb % p == 0 and 2 * p <= hb <= H
    r = Ho % hb
    assert r == 0 or r >= p, (
        "TODO(synk): awkward pad/H residual (only possible for pad_pixels > 1)")

    n_t = pl.cdiv(Ho, hb)               # >= 2 always (hb <= H < Ho)
    r_last = Ho - (n_t - 1) * hb        # valid rows in the last output block
    n_x_blocks = pl.cdiv(H, hb)
    n_halo = pl.cdiv(H, p)
    hb_over_p = hb // p

    def param_map(n, c, t):
        return (0, c)

    def x_map(n, c, t):
        # Clamp: the last output-row block may not need a fresh input block.
        return (n, jnp.minimum(t, n_x_blocks - 1), 0, c)

    def halo_map(n, c, t):
        # The `pad` input rows just above this output-row block (clamped at the
        # edges; clamped content is only read where the result is the border).
        i = jnp.minimum(jnp.maximum(t * hb_over_p - 1, 0), n_halo - 1)
        return (n, i, 0, c)

    def out_map(n, c, t):
        return (n, t, 0, c)

    # Double-buffered x + halo + out blocks, f32 compute headroom, 2 MiB margin.
    blk = (hb * W + p * W + hb * Wo) * cb * itemsize
    vmem_limit = int(max(2 * blk + hb * W * cb * 4 + (2 << 20), 4 << 20))

    kernel = functools.partial(_bn_pad_kernel, pad=p, r_last=r_last)
    return pl.pallas_call(
        kernel,
        out_shape=jax.ShapeDtypeStruct((N, Ho, Wo, C), x.dtype),
        grid=(N, n_c, n_t),
        in_specs=[
            pl.BlockSpec((1, cb), param_map),          # scale
            pl.BlockSpec((1, cb), param_map),          # shift (== pad value)
            pl.BlockSpec((1, p, W, cb), halo_map),     # input halo rows
            pl.BlockSpec((1, hb, W, cb), x_map),       # input row block
        ],
        out_specs=pl.BlockSpec((1, hb, Wo, cb), out_map),
        compiler_params=pltpu.CompilerParams(
            # Every grid step is independent -> shardable across v7x's 2 cores.
            dimension_semantics=("parallel", "parallel", "parallel"),
            vmem_limit_bytes=vmem_limit),
        cost_estimate=cost,
    )(scale, shift, x, x)


def bn_and_pad(x_nchw, weight, bias, running_mean, running_var, *,
               eps=1e-5, pad_pixels=1):
    """PyTorch-layout (NCHW) convenience wrapper around the NHWC kernel.

    Layout plumbing only. TODO(synk): keep activations NHWC end-to-end (or fuse
    BN+pad into RepConv's adjacent 1x1 / depthwise-3x3 convs) - each transpose
    here re-reads/re-writes the whole activation in HBM and dominates this
    mem-bound op end-to-end.
    """
    x = jnp.transpose(x_nchw, (0, 2, 3, 1))
    y = bn_and_pad_nhwc(x, weight, bias, running_mean, running_var,
                        eps=eps, pad_pixels=pad_pixels)
    return jnp.transpose(y, (0, 3, 1, 2))


# --------------------------------------------------------------------------
# Reference (pure JAX, PyTorch formula, NCHW) and self-test
# --------------------------------------------------------------------------
def _reference_nchw(x, weight, bias, running_mean, running_var, eps, pad):
    inv_std = 1.0 / jnp.sqrt(running_var + eps)
    y = ((x - running_mean[None, :, None, None])
         * (weight * inv_std)[None, :, None, None] + bias[None, :, None, None])
    if pad > 0:
        pv = (bias - running_mean * weight * inv_std)[None, :, None, None]
        y = jnp.pad(y, ((0, 0), (0, 0), (pad, pad), (pad, pad)))
        y = y.at[:, :, 0:pad, :].set(pv)
        y = y.at[:, :, -pad:, :].set(pv)
        y = y.at[:, :, :, 0:pad].set(pv)
        y = y.at[:, :, :, -pad:].set(pv)
    return y


if __name__ == "__main__":
    key = jax.random.PRNGKey(0)
    k1, k2, k3, k4, k5 = jax.random.split(key, 5)

    N, C, H, W = 2, 4, 16, 16
    pad_pixels, eps = 1, 1e-5

    x_nchw = jax.random.normal(k1, (N, C, H, W), dtype=jnp.float32)
    weight = 1.0 + 0.1 * jax.random.normal(k2, (C,), dtype=jnp.float32)
    bias = 0.1 * jax.random.normal(k3, (C,), dtype=jnp.float32)
    running_mean = 0.2 * jax.random.normal(k4, (C,), dtype=jnp.float32)
    running_var = jnp.abs(jax.random.normal(k5, (C,), dtype=jnp.float32)) + 0.5

    ref_nchw = _reference_nchw(x_nchw, weight, bias, running_mean, running_var,
                               eps, pad_pixels)
    ref_nhwc = jnp.transpose(ref_nchw, (0, 2, 3, 1))

    # --- primary channels-last path (auto row-blocking) ---
    x_nhwc = jnp.transpose(x_nchw, (0, 2, 3, 1))
    out = jax.block_until_ready(
        bn_and_pad_nhwc(x_nhwc, weight, bias, running_mean, running_var,
                        eps=eps, pad_pixels=pad_pixels))
    assert out.shape == (N, H + 2 * pad_pixels, W + 2 * pad_pixels, C)
    assert out.dtype == x_nhwc.dtype
    assert jnp.allclose(out, ref_nhwc, atol=1e-5, rtol=1e-5)

    # --- multiple row blocks (exercises halo + last-block paths) ---
    out_rb = jax.block_until_ready(
        bn_and_pad_nhwc(x_nhwc, weight, bias, running_mean, running_var,
                        eps=eps, pad_pixels=pad_pixels, row_block=4))
    assert jnp.allclose(out_rb, ref_nhwc, atol=1e-5, rtol=1e-5)

    # --- bf16 I/O (compute stays f32 in-kernel) ---
    out_bf16 = jax.block_until_ready(
        bn_and_pad_nhwc(x_nhwc.astype(jnp.bfloat16), weight, bias, running_mean,
                        running_var, eps=eps, pad_pixels=pad_pixels))
    ref_bf16 = _reference_nchw(x_nchw.astype(jnp.bfloat16).astype(jnp.float32),
                               weight, bias, running_mean, running_var,
                               eps, pad_pixels)
    assert out_bf16.dtype == jnp.bfloat16
    assert jnp.allclose(out_bf16.astype(jnp.float32),
                        jnp.transpose(ref_bf16, (0, 2, 3, 1)),
                        atol=5e-2, rtol=5e-2)

    # --- PyTorch-layout (NCHW) wrapper, for parity with the original module ---
    out_nchw = jax.block_until_ready(
        bn_and_pad(x_nchw, weight, bias, running_mean, running_var,
                   eps=eps, pad_pixels=pad_pixels))
    assert jnp.allclose(out_nchw, ref_nchw, atol=1e-5, rtol=1e-5)

    # TODO(synk): training-mode BatchNorm (batch statistics + running-stat
    # updates) and RepConv's Conv2dLSQ quantized convolutions (class not given
    # in the spec) are not implemented; this kernel is the BNAndPadLayer
    # eval-mode forward.
    print("KERNEL_OK")
</pallas_src>

<mosaic_0001>
module attributes {stable_mosaic.version = 11 : i64} {
  func.func @_bn_pad_kernel(%arg0: i32, %arg1: i32, %arg2: i32, %arg3: memref<1x4xf32, #tpu.memory_space<vmem>>, %arg4: memref<1x4xf32, #tpu.memory_space<vmem>>, %arg5: memref<1x1x16x4xf32, #tpu.memory_space<vmem>>, %arg6: memref<1x16x16x4xf32, #tpu.memory_space<vmem>>, %arg7: memref<1x16x18x4xf32, #tpu.memory_space<vmem>>) attributes {dimension_semantics = [#tpu.dimension_semantics<parallel>, #tpu.dimension_semantics<parallel>, #tpu.dimension_semantics<parallel>], iteration_bounds = array<i64: 2, 1, 2>, scalar_prefetch = 0 : i64, scratch_operands = 0 : i64, tpu.core_type = #tpu.core_type<tc>, window_params = [{transform_indices = @transform_0, window_bounds = array<i64: 1, 4>}, {transform_indices = @transform_1, window_bounds = array<i64: 1, 4>}, {transform_indices = @transform_2, window_bounds = array<i64: 1, 1, 16, 4>}, {transform_indices = @transform_3, window_bounds = array<i64: 1, 16, 16, 4>}, {transform_indices = @transform_4, window_bounds = array<i64: 1, 16, 18, 4>}]} {
    %c0 = arith.constant 0 : index
    %c0_0 = arith.constant 0 : index
    %0 = vector.load %arg3[%c0, %c0_0] : memref<1x4xf32, #tpu.memory_space<vmem>>, vector<1x4xf32>
    %c0_1 = arith.constant 0 : index
    %c0_2 = arith.constant 0 : index
    %1 = vector.load %arg4[%c0_1, %c0_2] : memref<1x4xf32, #tpu.memory_space<vmem>>, vector<1x4xf32>
    %2 = vector.shape_cast %1 : vector<1x4xf32> to vector<1x1x4xf32>
    %3 = vector.broadcast %2 : vector<1x1x4xf32> to vector<16x1x4xf32>
    %c0_3 = arith.constant 0 : index
    %c0_4 = arith.constant 0 : index
    %c0_5 = arith.constant 0 : index
    %c0_6 = arith.constant 0 : index
    %4 = vector.load %arg7[%c0_3, %c0_4, %c0_5, %c0_6] : memref<1x16x18x4xf32, #tpu.memory_space<vmem>>, vector<1x16x1x4xf32>
    %5 = vector.shape_cast %4 : vector<1x16x1x4xf32> to vector<16x1x4xf32>
    %6 = vector.shape_cast %3 : vector<16x1x4xf32> to vector<1x16x1x4xf32>
    tpu.vector_store %arg7[%c0_3, %c0_4, %c0_5, %c0_6], %6 {strides = array<i32>} : memref<1x16x18x4xf32, #tpu.memory_space<vmem>>, vector<1x16x1x4xf32>,
    %c0_7 = arith.constant 0 : index
    %c0_8 = arith.constant 0 : index
    %c17 = arith.constant 17 : index
    %c0_9 = arith.constant 0 : index
    %7 = vector.load %arg7[%c0_7, %c0_8, %c17, %c0_9] : memref<1x16x18x4xf32, #tpu.memory_space<vmem>>, vector<1x16x1x4xf32>
    %8 = vector.shape_cast %7 : vector<1x16x1x4xf32> to vector<16x1x4xf32>
    %9 = vector.shape_cast %3 : vector<16x1x4xf32> to vector<1x16x1x4xf32>
    tpu.vector_store %arg7[%c0_7, %c0_8, %c17, %c0_9], %9 {strides = array<i32>} : memref<1x16x18x4xf32, #tpu.memory_space<vmem>>, vector<1x16x1x4xf32>,
    %c1_i32 = arith.constant 1 : i32
    %10 = arith.cmpi slt, %arg2, %c1_i32 : i32
    %11 = arith.extui %10 : i1 to i32
    %c0_i32 = arith.constant 0 : i32
    %12 = arith.cmpi ne, %11, %c0_i32 : i32
    scf.if %12 {
      %c0_i32_12 = arith.constant 0 : i32
      %16 = arith.cmpi eq, %arg2, %c0_i32_12 : i32
      %17 = vector.shape_cast %1 : vector<1x4xf32> to vector<1x1x4xf32>
      %18 = vector.broadcast %17 : vector<1x1x4xf32> to vector<1x16x4xf32>
      %c0_13 = arith.constant 0 : index
      %c0_14 = arith.constant 0 : index
      %c0_15 = arith.constant 0 : index
      %c0_16 = arith.constant 0 : index
      %19 = vector.load %arg5[%c0_13, %c0_14, %c0_15, %c0_16] : memref<1x1x16x4xf32, #tpu.memory_space<vmem>>, vector<1x1x16x4xf32>
      %20 = vector.shape_cast %19 : vector<1x1x16x4xf32> to vector<1x16x4xf32>
      %21 = vector.shape_cast %0 : vector<1x4xf32> to vector<1x1x4xf32>
      %22 = vector.broadcast %21 : vector<1x1x4xf32> to vector<1x16x4xf32>
      %23 = arith.mulf %20, %22 : vector<1x16x4xf32>
      %24 = vector.shape_cast %1 : vector<1x4xf32> to vector<1x1x4xf32>
      %25 = vector.broadcast %24 : vector<1x1x4xf32> to vector<1x16x4xf32>
      %26 = arith.addf %23, %25 : vector<1x16x4xf32>
      %27 = arith.select %16, %18, %26 : vector<1x16x4xf32>
      %c0_17 = arith.constant 0 : index
      %c0_18 = arith.constant 0 : index
      %c1 = arith.constant 1 : index
      %c0_19 = arith.constant 0 : index
      %28 = vector.load %arg7[%c0_17, %c0_18, %c1, %c0_19] : memref<1x16x18x4xf32, #tpu.memory_space<vmem>>, vector<1x1x16x4xf32>
      %29 = vector.shape_cast %28 : vector<1x1x16x4xf32> to vector<1x16x4xf32>
      %30 = vector.shape_cast %27 : vector<1x16x4xf32> to vector<1x1x16x4xf32>
      tpu.vector_store %arg7[%c0_17, %c0_18, %c1, %c0_19], %30 {strides = array<i32>} : memref<1x16x18x4xf32, #tpu.memory_space<vmem>>, vector<1x1x16x4xf32>,
      %c0_20 = arith.constant 0 : index
      %c0_21 = arith.constant 0 : index
      %c0_22 = arith.constant 0 : index
      %c0_23 = arith.constant 0 : index
      %31 = vector.load %arg6[%c0_20, %c0_21, %c0_22, %c0_23] : memref<1x16x16x4xf32, #tpu.memory_space<vmem>>, vector<1x15x16x4xf32>
      %32 = vector.shape_cast %31 : vector<1x15x16x4xf32> to vector<15x16x4xf32>
      %33 = vector.shape_cast %0 : vector<1x4xf32> to vector<1x1x4xf32>
      %34 = vector.broadcast %33 : vector<1x1x4xf32> to vector<15x16x4xf32>
      %35 = arith.mulf %32, %34 : vector<15x16x4xf32>
      %36 = vector.shape_cast %1 : vector<1x4xf32> to vector<1x1x4xf32>
      %37 = vector.broadcast %36 : vector<1x1x4xf32> to vector<15x16x4xf32>
      %38 = arith.addf %35, %37 : vector<15x16x4xf32>
      %c0_24 = arith.constant 0 : index
      %c1_25 = arith.constant 1 : index
      %c1_26 = arith.constant 1 : index
      %c0_27 = arith.constant 0 : index
      %39 = vector.load %arg7[%c0_24, %c1_25, %c1_26, %c0_27] : memref<1x16x18x4xf32, #tpu.memory_space<vmem>>, vector<1x15x16x4xf32>
      %40 = vector.shape_cast %39 : vector<1x15x16x4xf32> to vector<15x16x4xf32>
      %41 = vector.shape_cast %38 : vector<15x16x4xf32> to vector<1x15x16x4xf32>
      tpu.vector_store %arg7[%c0_24, %c1_25, %c1_26, %c0_27], %41 {strides = array<i32>} : memref<1x16x18x4xf32, #tpu.memory_space<vmem>>, vector<1x15x16x4xf32>,
    } else {
    }
    %c1_i32_10 = arith.constant 1 : i32
    %13 = arith.cmpi eq, %arg2, %c1_i32_10 : i32
    %14 = arith.extui %13 : i1 to i32
    %c0_i32_11 = arith.constant 0 : i32
    %15 = arith.cmpi ne, %14, %c0_i32_11 : i32
    scf.if %15 {
      %c0_12 = arith.constant 0 : index
      %c0_13 = arith.constant 0 : index
      %c0_14 = arith.constant 0 : index
      %c0_15 = arith.constant 0 : index
      %16 = vector.load %arg5[%c0_12, %c0_13, %c0_14, %c0_15] : memref<1x1x16x4xf32, #tpu.memory_space<vmem>>, vector<1x1x16x4xf32>
      %17 = vector.shape_cast %16 : vector<1x1x16x4xf32> to vector<1x16x4xf32>
      %18 = vector.shape_cast %0 : vector<1x4xf32> to vector<1x1x4xf32>
      %19 = vector.broadcast %18 : vector<1x1x4xf32> to vector<1x16x4xf32>
      %20 = arith.mulf %17, %19 : vector<1x16x4xf32>
      %21 = vector.shape_cast %1 : vector<1x4xf32> to vector<1x1x4xf32>
      %22 = vector.broadcast %21 : vector<1x1x4xf32> to vector<1x16x4xf32>
      %23 = arith.addf %20, %22 : vector<1x16x4xf32>
      %c0_16 = arith.constant 0 : index
      %c0_17 = arith.constant 0 : index
      %c1 = arith.constant 1 : index
      %c0_18 = arith.constant 0 : index
      %24 = vector.load %arg7[%c0_16, %c0_17, %c1, %c0_18] : memref<1x16x18x4xf32, #tpu.memory_space<vmem>>, vector<1x1x16x4xf32>
      %25 = vector.shape_cast %24 : vector<1x1x16x4xf32> to vector<1x16x4xf32>
      %26 = vector.shape_cast %23 : vector<1x16x4xf32> to vector<1x1x16x4xf32>
      tpu.vector_store %arg7[%c0_16, %c0_17, %c1, %c0_18], %26 {strides = array<i32>} : memref<1x16x18x4xf32, #tpu.memory_space<vmem>>, vector<1x1x16x4xf32>,
      %27 = vector.shape_cast %1 : vector<1x4xf32> to vector<1x1x4xf32>
      %28 = vector.broadcast %27 : vector<1x1x4xf32> to vector<1x16x4xf32>
      %c0_19 = arith.constant 0 : index
      %c1_20 = arith.constant 1 : index
      %c1_21 = arith.constant 1 : index
      %c0_22 = arith.constant 0 : index
      %29 = vector.load %arg7[%c0_19, %c1_20, %c1_21, %c0_22] : memref<1x16x18x4xf32, #tpu.memory_space<vmem>>, vector<1x1x16x4xf32>
      %30 = vector.shape_cast %29 : vector<1x1x16x4xf32> to vector<1x16x4xf32>
      %31 = vector.shape_cast %28 : vector<1x16x4xf32> to vector<1x1x16x4xf32>
      tpu.vector_store %arg7[%c0_19, %c1_20, %c1_21, %c0_22], %31 {strides = array<i32>} : memref<1x16x18x4xf32, #tpu.memory_space<vmem>>, vector<1x1x16x4xf32>,
    } else {
    }
    return
  }
  func.func @transform_0(%arg0: i32, %arg1: i32, %arg2: i32) -> (i32, i32) {
    %c0_i32 = arith.constant 0 : i32
    %c0_i32_0 = arith.constant 0 : i32
    return %c0_i32, %arg1 : i32, i32
  }
  func.func @transform_1(%arg0: i32, %arg1: i32, %arg2: i32) -> (i32, i32) {
    %c0_i32 = arith.constant 0 : i32
    %c0_i32_0 = arith.constant 0 : i32
    return %c0_i32, %arg1 : i32, i32
  }
  func.func @transform_2(%arg0: i32, %arg1: i32, %arg2: i32) -> (i32, i32, i32, i32) {
    %c16_i32 = arith.constant 16 : i32
    %0 = arith.muli %arg2, %c16_i32 : i32
    %c1_i32 = arith.constant 1 : i32
    %1 = arith.subi %0, %c1_i32 : i32
    %c0_i32 = arith.constant 0 : i32
    %2 = arith.maxsi %1, %c0_i32 : i32
    %c15_i32 = arith.constant 15 : i32
    %3 = arith.minsi %2, %c15_i32 : i32
    %c0_i32_0 = arith.constant 0 : i32
    %c0_i32_1 = arith.constant 0 : i32
    return %arg0, %3, %c0_i32_0, %arg1 : i32, i32, i32, i32
  }
  func.func @transform_3(%arg0: i32, %arg1: i32, %arg2: i32) -> (i32, i32, i32, i32) {
    %c0_i32 = arith.constant 0 : i32
    %0 = arith.minsi %arg2, %c0_i32 : i32
    %c0_i32_0 = arith.constant 0 : i32
    %c0_i32_1 = arith.constant 0 : i32
    return %arg0, %0, %c0_i32_0, %arg1 : i32, i32, i32, i32
  }
  func.func @transform_4(%arg0: i32, %arg1: i32, %arg2: i32) -> (i32, i32, i32, i32) {
    %c0_i32 = arith.constant 0 : i32
    %c0_i32_0 = arith.constant 0 : i32
    return %arg0, %arg2, %c0_i32, %arg1 : i32, i32, i32, i32
  }
}

</mosaic_0001>

<llo_original>
// kernel: tpu_custom_call.1
$region0: #{tpu_custom_call.1}
  #allocation0 [shape = 'u32[]', space=smem, size = 0x4, offset = 0x4, fixed_abs, tag = 'smem constant byte address 0x4 - core index']
  #allocation1 [shape = 'u32[144,128]{1,0:T(1,128)}', space=vmem, size = 0x12000, scoped, tag = 'internal scratch']
  %s0 = inlined_call_operand.vmem [shape: f32[1,4], index: 0, kind: input, shape index: {}]
  %s1 = inlined_call_operand.vmem [shape: f32[1,4], index: 1, kind: input, shape index: {}]
  %s2 = inlined_call_operand.vmem [shape: f32[2,16,16,4], index: 2, kind: input, shape index: {}]
  %s3 = inlined_call_operand.vmem [shape: f32[2,16,16,4], index: 3, kind: input, shape index: {}]
  %s4 = inlined_call_operand.vmem [shape: f32[2,18,18,4], index: 4, kind: output, shape index: {}]
  %s5 = sld [smem:[#allocation0]]
  $region105: #{tpu_custom_call.1} parent=0
    _
  %s7 = ssub.s32 1, %s5
  %s8 = scalar_select 0, %s7, %s5
  $region1: #{tpu_custom_call.1} parent=0
    #allocation2 [shape = 'u8[393216]{0}', space=vmem, size = 0x60000, scoped, tag = 'output window, operand 0']
    loop: start=0, step=1, limit=6
    $region2: #{tpu_custom_call.1} parent=1 // loop_pre_header
      _
    $region3: #{tpu_custom_call.1} parent=1 // loop_header
      %s10 = sphi 0, %s14
      %p11 = scmp.ge.s32.totalorder %s10, 6
      %s17 = sphi 0, %s36
      %s18 = sphi 0, %s32
      %s19 = sphi 0, %s28
      %s20 = sphi 0, %s17
      %s21 = sphi 0, %s18
      %s22 = sphi 0, %s19
      %s23 = sphi 0, %s20
      %s24 = sphi 0, %s21
      %s25 = sphi 0, %s22
      %s39 = sphi 0, %s41
      %s42 = sphi 0, %s39
      %s43 = sphi 0, %s42
      %s59 = sphi 0, %s43
      %s65 = sphi 0, %s67
      %s68 = sphi 0, %s65
      %s69 = sphi 0, %s68
      %s85 = sphi 0, %s69
      %s107 = sphi 0, %s109
      %s110 = sphi 0, %s107
      %s111 = sphi 0, %s110
      %s127 = sphi 0, %s111
      %s141 = sphi 0, %s143
      %s144 = sphi 0, %s141
      %s145 = sphi 0, %s144
      %s161 = sphi 0, %s145
      %s171 = sphi 0, %s173
      %s174 = sphi 0, %s171
      %s175 = sphi 0, %s174
      %s191 = sphi 0, %s175
    $region4: #{tpu_custom_call.1} parent=1 // loop_header_branch
      %13 = sbr.rel (%p11) target = $region8
    $region5: #{tpu_custom_call.1} parent=1 // loop_body
      %s15 = ssub.s32 %s10, 1
      %s16 = ssub.s32 %s10, 2
      %s26 = sadd.s32 1, %s19
      %p27 = scmp.ge.s32.totalorder %s26, 2
      %s28 = scalar_select %p27, 0, %s26
      %s29 = sadd.s32 1, %s18
      %s30 = scalar_select %p27, %s29, %s18
      %p31 = scmp.ge.s32.totalorder %s30, 1
      %s32 = scalar_select %p31, 0, %s30
      %s33 = sadd.s32 1, %s17
      %s34 = scalar_select %p31, %s33, %s17
      %p35 = scmp.ge.s32.totalorder %s34, 2
      %s36 = scalar_select %p35, 0, %s34
      %s37 = ssub.s32 %s18, %s32
      %p38 = scmp.eq.s32.totalorder %s37, 0
      %s40 = sadd.s32 %s39, 1
      %s41 = scalar_select %p38, %s39, %s40
      %p44 = pneg %p38
      %p45 = scmp.eq.s32.totalorder %s10, 3
      %p46 = por %p44, %p45
      %p47 = scmp.ne.s32.totalorder %s39, %s42
      %p48 = scmp.eq.s32.totalorder %s10, 0
      %p49 = por %p47, %p48
      %p50 = scmp.ne.s32.totalorder %s39, %s42
      %p51 = scmp.eq.s32.totalorder %s15, 3
      %p52 = por %p50, %p51
      %p53 = scmp.ne.s32.totalorder %s42, %s43
      %p54 = scmp.eq.s32.totalorder %s15, 0
      %p55 = por %p53, %p54
      %p56 = scmp.ne.s32.totalorder %s42, %s43
      %p57 = scmp.eq.s32.totalorder %s16, 3
      %p58 = por %p56, %p57
      %p60 = scmp.ne.s32.totalorder %s43, %s59
      %p61 = scmp.eq.s32.totalorder %s16, 0
      %p62 = por %p60, %p61
      %s63 = ssub.s32 %s18, %s32
      %p64 = scmp.eq.s32.totalorder %s63, 0
      %s66 = sadd.s32 %s65, 1
      %s67 = scalar_select %p64, %s65, %s66
      %p70 = pneg %p64
      %p71 = scmp.eq.s32.totalorder %s10, 3
      %p72 = por %p70, %p71
      %p73 = scmp.ne.s32.totalorder %s65, %s68
      %p74 = scmp.eq.s32.totalorder %s10, 0
      %p75 = por %p73, %p74
      %p76 = scmp.ne.s32.totalorder %s65, %s68
      %p77 = scmp.eq.s32.totalorder %s15, 3
      %p78 = por %p76, %p77
      %p79 = scmp.ne.s32.totalorder %s68, %s69
      %p80 = scmp.eq.s32.totalorder %s15, 0
      %p81 = por %p79, %p80
      %p82 = scmp.ne.s32.totalorder %s68, %s69
      %p83 = scmp.eq.s32.totalorder %s16, 3
      %p84 = por %p82, %p83
      %p86 = scmp.ne.s32.totalorder %s69, %s85
      %p87 = scmp.eq.s32.totalorder %s16, 0
      %p88 = por %p86, %p87
      %s89 = smul.u32 %s19, 16
      %s90 = ssub.s32 %s89, 1
      %p91 = scmp.gt.s32.totalorder %s90, 0
      %s92 = scalar_select %p91, %s90, 0
      %p93 = scmp.lt.s32.totalorder %s92, 15
      %s94 = scalar_select %p93, %s92, 15
      %s95 = smul.u32 %s28, 16
      %s96 = ssub.s32 %s95, 1
      %p97 = scmp.gt.s32.totalorder %s96, 0
      %s98 = scalar_select %p97, %s96, 0
      %p99 = scmp.lt.s32.totalorder %s98, 15
      %s100 = scalar_select %p99, %s98, 15
      %s101 = ssub.s32 %s17, %s36
      %s102 = ssub.s32 %s94, %s100
      %s103 = sor.u32 %s101, %s102
      %s104 = ssub.s32 %s18, %s32
      %s105 = sor.u32 %s103, %s104
      %p106 = scmp.eq.s32.totalorder %s105, 0
      %s108 = sadd.s32 %s107, 1
      %s109 = scalar_select %p106, %s107, %s108
      %p112 = pneg %p106
      %p113 = scmp.eq.s32.totalorder %s10, 3
      %p114 = por %p112, %p113
      %p115 = scmp.ne.s32.totalorder %s107, %s110
      %p116 = scmp.eq.s32.totalorder %s10, 0
      %p117 = por %p115, %p116
      %p118 = scmp.ne.s32.totalorder %s107, %s110
      %p119 = scmp.eq.s32.totalorder %s15, 3
      %p120 = por %p118, %p119
      %p121 = scmp.ne.s32.totalorder %s110, %s111
      %p122 = scmp.eq.s32.totalorder %s15, 0
      %p123 = por %p121, %p122
      %p124 = scmp.ne.s32.totalorder %s110, %s111
      %p125 = scmp.eq.s32.totalorder %s16, 3
      %p126 = por %p124, %p125
      %p128 = scmp.ne.s32.totalorder %s111, %s127
      %p129 = scmp.eq.s32.totalorder %s16, 0
      %p130 = por %p128, %p129
      %p131 = scmp.lt.s32.totalorder %s19, 0
      %s132 = scalar_select %p131, %s19, 0
      %p133 = scmp.lt.s32.totalorder %s28, 0
      %s134 = scalar_select %p133, %s28, 0
      %s135 = ssub.s32 %s17, %s36
      %s136 = ssub.s32 %s132, %s134
      %s137 = sor.u32 %s135, %s136
      %s138 = ssub.s32 %s18, %s32
      %s139 = sor.u32 %s137, %s138
      %p140 = scmp.eq.s32.totalorder %s139, 0
      %s142 = sadd.s32 %s141, 1
      %s143 = scalar_select %p140, %s141, %s142
      %p146 = pneg %p140
      %p147 = scmp.eq.s32.totalorder %s10, 3
      %p148 = por %p146, %p147
      %p149 = scmp.ne.s32.totalorder %s141, %s144
      %p150 = scmp.eq.s32.totalorder %s10, 0
      %p151 = por %p149, %p150
      %p152 = scmp.ne.s32.totalorder %s141, %s144
      %p153 = scmp.eq.s32.totalorder %s15, 3
      %p154 = por %p152, %p153
      %p155 = scmp.ne.s32.totalorder %s144, %s145
      %p156 = scmp.eq.s32.totalorder %s15, 0
      %p157 = por %p155, %p156
      %p158 = scmp.ne.s32.totalorder %s144, %s145
      %p159 = scmp.eq.s32.totalorder %s16, 3
      %p160 = por %p158, %p159
      %p162 = scmp.ne.s32.totalorder %s145, %s161
      %p163 = scmp.eq.s32.totalorder %s16, 0
      %p164 = por %p162, %p163
      %s165 = ssub.s32 %s17, %s36
      %s166 = ssub.s32 %s19, %s28
      %s167 = sor.u32 %s165, %s166
      %s168 = ssub.s32 %s18, %s32
      %s169 = sor.u32 %s167, %s168
      %p170 = scmp.eq.s32.totalorder %s169, 0
      %s172 = sadd.s32 %s171, 1
      %s173 = scalar_select %p170, %s171, %s172
      %p176 = pneg %p170
      %p177 = scmp.eq.s32.totalorder %s10, 3
      %p178 = por %p176, %p177
      %p179 = scmp.ne.s32.totalorder %s171, %s174
      %p180 = scmp.eq.s32.totalorder %s10, 0
      %p181 = por %p179, %p180
      %p182 = scmp.ne.s32.totalorder %s171, %s174
      %p183 = scmp.eq.s32.totalorder %s15, 3
      %p184 = por %p182, %p183
      %p185 = scmp.ne.s32.totalorder %s174, %s175
      %p186 = scmp.eq.s32.totalorder %s15, 0
      %p187 = por %p185, %p186
      %p188 = scmp.ne.s32.totalorder %s174, %s175
      %p189 = scmp.eq.s32.totalorder %s16, 3
      %p190 = por %p188, %p189
      %p192 = scmp.ne.s32.totalorder %s175, %s191
      %p193 = scmp.eq.s32.totalorder %s16, 0
      %p194 = por %p192, %p193
      %p195 = scmp.le.s32.totalorder 1, %s10
      %p196 = scmp.lt.s32.totalorder %s10, 5
      %p197 = pnand %p195, %p196
      %p198 = pneg %p197
      // Predicated region
      $region9: #{tpu_custom_call.1} parent=5 // pred_check
        _
      $region10: #{tpu_custom_call.1} parent=5 // pred_check_branch
        %200 = sbr.rel (%p197) target = $region12
      $region11: #{tpu_custom_call.1} parent=5 // pred_region
        %s201 = ssub.s32 %s10, 1
        // Predicated region
        $region13: #{tpu_custom_call.1} parent=11 // pred_check
          %p202 = pneg %p55
        $region14: #{tpu_custom_call.1} parent=11 // pred_check_branch
          %204 = sbr.rel (%p202) target = $region16
        $region15: #{tpu_custom_call.1} parent=11 // pred_region
          %p205 = scmp.lt.s32.totalorder %s21, 0
          %s206 = scalar_select %p205, %s21, 0
          %s207 = scalar_lea.vmem %s0, %s206
        $region16: #{tpu_custom_call.1} parent=11 // pred_fallthru
          _
        // Predicated region
        $region17: #{tpu_custom_call.1} parent=11 // pred_check
          %p208 = pneg %p81
        $region18: #{tpu_custom_call.1} parent=11 // pred_check_branch
          %210 = sbr.rel (%p208) target = $region20
        $region19: #{tpu_custom_call.1} parent=11 // pred_region
          %p211 = scmp.lt.s32.totalorder %s21, 0
          %s212 = scalar_select %p211, %s21, 0
          %s213 = scalar_lea.vmem %s1, %s212
        $region20: #{tpu_custom_call.1} parent=11 // pred_fallthru
          _
      $region12: #{tpu_custom_call.1} parent=5 // pred_fallthru
        _
      %p214 = scmp.lt.s32.totalorder %s10, 4
      // Predicated region
      $region21: #{tpu_custom_call.1} parent=5 // pred_check
        %p215 = pneg %p214
      $region22: #{tpu_custom_call.1} parent=5 // pred_check_branch
        %217 = sbr.rel (%p215) target = $region24
      $region23: #{tpu_custom_call.1} parent=5 // pred_region
        // Predicated region
        $region25: #{tpu_custom_call.1} parent=23 // pred_check
          %p218 = pneg %p117
        $region26: #{tpu_custom_call.1} parent=23 // pred_check_branch
          %220 = sbr.rel (%p218) target = $region28
        $region27: #{tpu_custom_call.1} parent=23 // pred_region
          %s221 = smul.u32 %s19, 16
          %s222 = ssub.s32 %s221, 1
          %p223 = scmp.gt.s32.totalorder %s222, 0
          %s224 = scalar_select %p223, %s222, 0
          %p225 = scmp.lt.s32.totalorder %s224, 15
          %s226 = scalar_select %p225, %s224, 15
          %p227 = scmp.lt.s32.totalorder %s17, 1
          %s228 = scalar_select %p227, %s17, 1
          %p229 = scmp.lt.s32.totalorder %s226, 15
          %s230 = scalar_select %p229, %s226, 15
          %p231 = scmp.lt.s32.totalorder %s18, 0
          %s232 = scalar_select %p231, %s18, 0
          %s233 = smul.addr %s230, 2
          %s234 = sadd.s32 %s232, %s233
          %s235 = smul.addr %s228, 32
          %s236 = sadd.s32 %s234, %s235
          %s237 = smul.addr %s236, 8
          %s238 = scalar_lea.vmem %s2, %s237
          %s239 = smul.u32 %s19, 16
          %s240 = ssub.s32 %s239, 1
          %p241 = scmp.gt.s32.totalorder %s240, 0
          %s242 = scalar_select %p241, %s240, 0
          %p243 = scmp.lt.s32.totalorder %s242, 15
          %s244 = scalar_select %p243, %s242, 15
        $region28: #{tpu_custom_call.1} parent=23 // pred_fallthru
          _
        // Predicated region
        $region29: #{tpu_custom_call.1} parent=23 // pred_check
          %p245 = pneg %p151
        $region30: #{tpu_custom_call.1} parent=23 // pred_check_branch
          %247 = sbr.rel (%p245) target = $region32
        $region31: #{tpu_custom_call.1} parent=23 // pred_region
          %p248 = scmp.lt.s32.totalorder %s19, 0
          %s249 = scalar_select %p248, %s19, 0
          %s250 = smul.u32 16, %s249
          %p251 = scmp.lt.s32.totalorder %s17, 1
          %s252 = scalar_select %p251, %s17, 1
          %p253 = scmp.lt.s32.totalorder %s250, 15
          %s254 = scalar_select %p253, %s250, 15
          %p255 = scmp.lt.s32.totalorder %s18, 0
          %s256 = scalar_select %p255, %s18, 0
          %s257 = smul.addr %s254, 2
          %s258 = sadd.s32 %s256, %s257
          %s259 = smul.addr %s252, 32
          %s260 = sadd.s32 %s258, %s259
          %s261 = smul.addr %s260, 8
          %s262 = scalar_lea.vmem %s3, %s261
          %p263 = scmp.lt.s32.totalorder %s19, 0
          %s264 = scalar_select %p263, %s19, 0
          %s265 = smul.u32 16, %s264
        $region32: #{tpu_custom_call.1} parent=23 // pred_fallthru
          _
      $region24: #{tpu_custom_call.1} parent=5 // pred_fallthru
        _
      %p266 = scmp.le.s32.totalorder 1, %s10
      %p267 = scmp.lt.s32.totalorder %s10, 5
      %p268 = pnand %p266, %p267
      %p269 = pneg %p268
      // Predicated region
      $region33: #{tpu_custom_call.1} parent=5 // pred_check
        _
      $region34: #{tpu_custom_call.1} parent=5 // pred_check_branch
        %271 = sbr.rel (%p268) target = $region36
      $region35: #{tpu_custom_call.1} parent=5 // pred_region
        %s272 = ssub.s32 %s10, 1
        %p273 = scmp.lt.s32.totalorder %s21, 0
        %s274 = scalar_select %p273, %s21, 0
        %s275 = scalar_lea.vmem %s0, %s274
        %p276 = pneg %p55
        %p277 = pneg %p52
        %p278 = scmp.lt.s32.totalorder %s21, 0
        %s279 = scalar_select %p278, %s21, 0
        %s280 = scalar_lea.vmem %s1, %s279
        %p281 = pneg %p81
        %p282 = pneg %p78
        %s283 = smul.u32 %s22, 16
        %s284 = ssub.s32 %s283, 1
        %p285 = scmp.gt.s32.totalorder %s284, 0
        %s286 = scalar_select %p285, %s284, 0
        %p287 = scmp.lt.s32.totalorder %s286, 15
        %s288 = scalar_select %p287, %s286, 15
        %p289 = scmp.lt.s32.totalorder %s20, 1
        %s290 = scalar_select %p289, %s20, 1
        %p291 = scmp.lt.s32.totalorder %s288, 15
        %s292 = scalar_select %p291, %s288, 15
        %p293 = scmp.lt.s32.totalorder %s21, 0
        %s294 = scalar_select %p293, %s21, 0
        %s295 = smul.addr %s292, 2
        %s296 = sadd.s32 %s294, %s295
        %s297 = smul.addr %s290, 32
        %s298 = sadd.s32 %s296, %s297
        %s299 = smul.addr %s298, 8
        %s300 = scalar_lea.vmem %s2, %s299
        %p301 = pneg %p123
        %p302 = pneg %p120
        %p303 = scmp.lt.s32.totalorder %s22, 0
        %s304 = scalar_select %p303, %s22, 0
        %s305 = smul.u32 16, %s304
        %p306 = scmp.lt.s32.totalorder %s20, 1
        %s307 = scalar_select %p306, %s20, 1
        %p308 = scmp.lt.s32.totalorder %s305, 15
        %s309 = scalar_select %p308, %s305, 15
        %p310 = scmp.lt.s32.totalorder %s21, 0
        %s311 = scalar_select %p310, %s21, 0
        %s312 = smul.addr %s309, 2
        %s313 = sadd.s32 %s311, %s312
        %s314 = smul.addr %s307, 32
        %s315 = sadd.s32 %s313, %s314
        %s316 = smul.addr %s315, 8
        %s317 = scalar_lea.vmem %s3, %s316
        %p318 = pneg %p157
        %p319 = pneg %p154
        %p320 = pneg %p187
        %p321 = pneg %p184
        %s322 = sand.u32 %s174, 1
        %s323 = sand.u32 %s174, 1
        %s324 = smul.addr %s323, 384
        %s325 = scalar_lea.vmem [#allocation2], %s324
        %p326 = scmp.lt.s32.totalorder %s21, 0
        %s327 = scalar_select %p326, %s21, 0
        %s328 = scalar_lea.vmem %s0, %s327
        %p329 = scmp.lt.s32.totalorder %s21, 0
        %s330 = scalar_select %p329, %s21, 0
        %s331 = scalar_lea.vmem %s1, %s330
        %s332 = smul.u32 %s22, 16
        %s333 = ssub.s32 %s332, 1
        %p334 = scmp.gt.s32.totalorder %s333, 0
        %s335 = scalar_select %p334, %s333, 0
        %p336 = scmp.lt.s32.totalorder %s335, 15
        %s337 = scalar_select %p336, %s335, 15
        %p338 = scmp.lt.s32.totalorder %s20, 1
        %s339 = scalar_select %p338, %s20, 1
        %p340 = scmp.lt.s32.totalorder %s337, 15
        %s341 = scalar_select %p340, %s337, 15
        %p342 = scmp.lt.s32.totalorder %s21, 0
        %s343 = scalar_select %p342, %s21, 0
        %s344 = smul.addr %s341, 2
        %s345 = sadd.s32 %s343, %s344
        %s346 = smul.addr %s339, 32
        %s347 = sadd.s32 %s345, %s346
        %s348 = smul.addr %s347, 8
        %s349 = scalar_lea.vmem %s2, %s348
        %s350 = smul.u32 %s22, 16
        %s351 = ssub.s32 %s350, 1
        %p352 = scmp.gt.s32.totalorder %s351, 0
        %s353 = scalar_select %p352, %s351, 0
        %p354 = scmp.lt.s32.totalorder %s353, 15
        %s355 = scalar_select %p354, %s353, 15
        %p356 = scmp.lt.s32.totalorder %s22, 0
        %s357 = scalar_select %p356, %s22, 0
        %s358 = smul.u32 16, %s357
        %p359 = scmp.lt.s32.totalorder %s20, 1
        %s360 = scalar_select %p359, %s20, 1
        %p361 = scmp.lt.s32.totalorder %s358, 15
        %s362 = scalar_select %p361, %s358, 15
        %p363 = scmp.lt.s32.totalorder %s21, 0
        %s364 = scalar_select %p363, %s21, 0
        %s365 = smul.addr %s362, 2
        %s366 = sadd.s32 %s364, %s365
        %s367 = smul.addr %s360, 32
        %s368 = sadd.s32 %s366, %s367
        %s369 = smul.addr %s368, 8
        %s370 = scalar_lea.vmem %s3, %s369
        %p371 = scmp.lt.s32.totalorder %s22, 0
        %s372 = scalar_select %p371, %s22, 0
        %s373 = smul.u32 16, %s372
        %s374 = smul.u32 16, %s22
        %s375 = ssub.s32 18, %s374
        %p376 = scmp.lt.s32.totalorder %s375, 16
        %s377 = scalar_select %p376, %s375, 16
        %s378 = smul.u32 128, %s377
        %s379 = smul.u32 %s378, 3
        %v380 = vld [vmem:[%s328] sm:$0x1]
        %v381 = vld [vmem:[%s331] sm:$0x1]
        %vm382 = vcmask 24576
        %383 = vst.msk [vmem:[%s325] sm:$0x1] %vm382, %v381
        %384 = vst.msk [vmem:[%s325 + $0x18] sm:$0x1] %vm382, %v381
        %385 = vst.msk [vmem:[%s325 + $0x30] sm:$0x1] %vm382, %v381
        %386 = vst.msk [vmem:[%s325 + $0x48] sm:$0x1] %vm382, %v381
        %387 = vst.msk [vmem:[%s325 + $0x60] sm:$0x1] %vm382, %v381
        %388 = vst.msk [vmem:[%s325 + $0x78] sm:$0x1] %vm382, %v381
        %389 = vst.msk [vmem:[%s325 + $0x90] sm:$0x1] %vm382, %v381
        %390 = vst.msk [vmem:[%s325 + $0xa8] sm:$0x1] %vm382, %v381
        %391 = vst.msk [vmem:[%s325 + $0xc0] sm:$0x1] %vm382, %v381
        %392 = vst.msk [vmem:[%s325 + $0xd8] sm:$0x1] %vm382, %v381
        %393 = vst.msk [vmem:[%s325 + $0xf0] sm:$0x1] %vm382, %v381
        %394 = vst.msk [vmem:[%s325 + $0x108] sm:$0x1] %vm382, %v381
        %395 = vst.msk [vmem:[%s325 + $0x120] sm:$0x1] %vm382, %v381
        %396 = vst.msk [vmem:[%s325 + $0x138] sm:$0x1] %vm382, %v381
        %397 = vst.msk [vmem:[%s325 + $0x150] sm:$0x1] %vm382, %v381
        %398 = vst.msk [vmem:[%s325 + $0x168] sm:$0x1] %vm382, %v381
        %399 = vst.msk [vmem:[%s325 + $0x11] sm:$0x1] %vm382, %v381
        %400 = vst.msk [vmem:[%s325 + $0x29] sm:$0x1] %vm382, %v381
        %401 = vst.msk [vmem:[%s325 + $0x41] sm:$0x1] %vm382, %v381
        %402 = vst.msk [vmem:[%s325 + $0x59] sm:$0x1] %vm382, %v381
        %403 = vst.msk [vmem:[%s325 + $0x71] sm:$0x1] %vm382, %v381
        %404 = vst.msk [vmem:[%s325 + $0x89] sm:$0x1] %vm382, %v381
        %405 = vst.msk [vmem:[%s325 + $0xa1] sm:$0x1] %vm382, %v381
        %406 = vst.msk [vmem:[%s325 + $0xb9] sm:$0x1] %vm382, %v381
        %407 = vst.msk [vmem:[%s325 + $0xd1] sm:$0x1] %vm382, %v381
        %408 = vst.msk [vmem:[%s325 + $0xe9] sm:$0x1] %vm382, %v381
        %409 = vst.msk [vmem:[%s325 + $0x101] sm:$0x1] %vm382, %v381
        %410 = vst.msk [vmem:[%s325 + $0x119] sm:$0x1] %vm382, %v381
        %411 = vst.msk [vmem:[%s325 + $0x131] sm:$0x1] %vm382, %v381
        %412 = vst.msk [vmem:[%s325 + $0x149] sm:$0x1] %vm382, %v381
        %413 = vst.msk [vmem:[%s325 + $0x161] sm:$0x1] %vm382, %v381
        %414 = vst.msk [vmem:[%s325 + $0x179] sm:$0x1] %vm382, %v381
        %p415 = scmp.lt.s32.totalorder %s22, 1
        // Predicated region
        $region37: #{tpu_custom_call.1} parent=35 // pred_check
          %p416 = pneg %p415
        $region38: #{tpu_custom_call.1} parent=35 // pred_check_branch
          %418 = sbr.rel (%p416) target = $region40
        $region39: #{tpu_custom_call.1} parent=35 // pred_region
          %p419 = scmp.eq.s32.totalorder %s22, 0
          %v421 = vlaneseq
          %v422 = vshrl.u32 %v421, 7
          %v423 = vsub.s32 0, %v422
          %v424 = vrot.slane %v381, %v423
          %v426 = vld [vmem:[%s349] sm:$0xff]
          %v427 = vld [vmem:[%s349 + $0x8] sm:$0xff]
          %v429 = vlaneseq
          %v430 = vshrl.u32 %v429, 7
          %v431 = vsub.s32 0, %v430
          %v432 = vrot.slane %v380, %v431
          %v434 = vmul.f32 %v426, %v432
          %v435 = vmul.f32 %v427, %v432
          %v436 = vadd.f32 %v434, %v424
          %v437 = vadd.f32 %v435, %v424
          %s438 = scalar_select %p419, 1, 0
          %v439 = vstv %s438
          %vm440 = vcmp.eq.s32.totalorder %v439, 1
          %v441 = vsel %vm440, %v424, %v436
          %v442 = vsel %vm440, %v424, %v437
          %vm443 = vcmask 31744
          %444 = vst.msk [vmem:[%s325 + $0x1] sm:$0xff] %vm443, %v441
          %445 = vst.msk [vmem:[%s325 + $0x9] sm:$0xff] %vm443, %v442
          %v446 = vld [vmem:[%s370] sm:$0xff]
          %v447 = vld [vmem:[%s370 + $0x8] sm:$0xff]
          %v448 = vld [vmem:[%s370 + $0x10] sm:$0xff]
          %v449 = vld [vmem:[%s370 + $0x18] sm:$0xff]
          %v450 = vld [vmem:[%s370 + $0x20] sm:$0xff]
          %v451 = vld [vmem:[%s370 + $0x28] sm:$0xff]
          %v452 = vld [vmem:[%s370 + $0x30] sm:$0xff]
          %v453 = vld [vmem:[%s370 + $0x38] sm:$0xff]
          %v454 = vld [vmem:[%s370 + $0x40] sm:$0xff]
          %v455 = vld [vmem:[%s370 + $0x48] sm:$0xff]
          %v456 = vld [vmem:[%s370 + $0x50] sm:$0xff]
          %v457 = vld [vmem:[%s370 + $0x58] sm:$0xff]
          %v458 = vld [vmem:[%s370 + $0x60] sm:$0xff]
          %v459 = vld [vmem:[%s370 + $0x68] sm:$0xff]
          %v460 = vld [vmem:[%s370 + $0x70] sm:$0xff]
          %v461 = vld [vmem:[%s370 + $0x78] sm:$0xff]
          %v462 = vld [vmem:[%s370 + $0x80] sm:$0xff]
          %v463 = vld [vmem:[%s370 + $0x88] sm:$0xff]
          %v464 = vld [vmem:[%s370 + $0x90] sm:$0xff]
          %v465 = vld [vmem:[%s370 + $0x98] sm:$0xff]
          %v466 = vld [vmem:[%s370 + $0xa0] sm:$0xff]
          %v467 = vld [vmem:[%s370 + $0xa8] sm:$0xff]
          %v468 = vld [vmem:[%s370 + $0xb0] sm:$0xff]
          %v469 = vld [vmem:[%s370 + $0xb8] sm:$0xff]
          %v470 = vld [vmem:[%s370 + $0xc0] sm:$0xff]
          %v471 = vld [vmem:[%s370 + $0xc8] sm:$0xff]
          %v472 = vld [vmem:[%s370 + $0xd0] sm:$0xff]
          %v473 = vld [vmem:[%s370 + $0xd8] sm:$0xff]
          %v474 = vld [vmem:[%s370 + $0xe0] sm:$0xff]
          %v475 = vld [vmem:[%s370 + $0xe8] sm:$0xff]
          %v476 = vmul.f32 %v446, %v432
          %v477 = vmul.f32 %v447, %v432
          %v478 = vmul.f32 %v448, %v432
          %v479 = vmul.f32 %v449, %v432
          %v480 = vmul.f32 %v450, %v432
          %v481 = vmul.f32 %v451, %v432
          %v482 = vmul.f32 %v452, %v432
          %v483 = vmul.f32 %v453, %v432
          %v484 = vmul.f32 %v454, %v432
          %v485 = vmul.f32 %v455, %v432
          %v486 = vmul.f32 %v456, %v432
          %v487 = vmul.f32 %v457, %v432
          %v488 = vmul.f32 %v458, %v432
          %v489 = vmul.f32 %v459, %v432
          %v490 = vmul.f32 %v460, %v432
          %v491 = vmul.f32 %v461, %v432
          %v492 = vmul.f32 %v462, %v432
          %v493 = vmul.f32 %v463, %v432
          %v494 = vmul.f32 %v464, %v432
          %v495 = vmul.f32 %v465, %v432
          %v496 = vmul.f32 %v466, %v432
          %v497 = vmul.f32 %v467, %v432
          %v498 = vmul.f32 %v468, %v432
          %v499 = vmul.f32 %v469, %v432
          %v500 = vmul.f32 %v470, %v432
          %v501 = vmul.f32 %v471, %v432
          %v502 = vmul.f32 %v472, %v432
          %v503 = vmul.f32 %v473, %v432
          %v504 = vmul.f32 %v474, %v432
          %v505 = vmul.f32 %v475, %v432
          %v506 = vadd.f32 %v476, %v424
          %v507 = vadd.f32 %v477, %v424
          %v508 = vadd.f32 %v478, %v424
          %v509 = vadd.f32 %v479, %v424
          %v510 = vadd.f32 %v480, %v424
          %v511 = vadd.f32 %v481, %v424
          %v512 = vadd.f32 %v482, %v424
          %v513 = vadd.f32 %v483, %v424
          %v514 = vadd.f32 %v484, %v424
          %v515 = vadd.f32 %v485, %v424
          %v516 = vadd.f32 %v486, %v424
          %v517 = vadd.f32 %v487, %v424
          %v518 = vadd.f32 %v488, %v424
          %v519 = vadd.f32 %v489, %v424
          %v520 = vadd.f32 %v490, %v424
          %v521 = vadd.f32 %v491, %v424
          %v522 = vadd.f32 %v492, %v424
          %v523 = vadd.f32 %v493, %v424
          %v524 = vadd.f32 %v494, %v424
          %v525 = vadd.f32 %v495, %v424
          %v526 = vadd.f32 %v496, %v424
          %v527 = vadd.f32 %v497, %v424
          %v528 = vadd.f32 %v498, %v424
          %v529 = vadd.f32 %v499, %v424
          %v530 = vadd.f32 %v500, %v424
          %v531 = vadd.f32 %v501, %v424
          %v532 = vadd.f32 %v502, %v424
          %v533 = vadd.f32 %v503, %v424
          %v534 = vadd.f32 %v504, %v424
          %v535 = vadd.f32 %v505, %v424
          %s536 = scalar_lea.vmem %s325, 24 [#allocation2]
          %537 = vst.msk [vmem:[%s536 + $0x1] sm:$0xff] %vm443, %v506
          %538 = vst.msk [vmem:[%s536 + $0x9] sm:$0xff] %vm443, %v507
          %539 = vst.msk [vmem:[%s536 + $0x19] sm:$0xff] %vm443, %v508
          %540 = vst.msk [vmem:[%s536 + $0x21] sm:$0xff] %vm443, %v509
          %541 = vst.msk [vmem:[%s536 + $0x31] sm:$0xff] %vm443, %v510
          %542 = vst.msk [vmem:[%s536 + $0x39] sm:$0xff] %vm443, %v511
          %543 = vst.msk [vmem:[%s536 + $0x49] sm:$0xff] %vm443, %v512
          %544 = vst.msk [vmem:[%s536 + $0x51] sm:$0xff] %vm443, %v513
          %545 = vst.msk [vmem:[%s536 + $0x61] sm:$0xff] %vm443, %v514
          %546 = vst.msk [vmem:[%s536 + $0x69] sm:$0xff] %vm443, %v515
          %547 = vst.msk [vmem:[%s536 + $0x79] sm:$0xff] %vm443, %v516
          %548 = vst.msk [vmem:[%s536 + $0x81] sm:$0xff] %vm443, %v517
          %549 = vst.msk [vmem:[%s536 + $0x91] sm:$0xff] %vm443, %v518
          %550 = vst.msk [vmem:[%s536 + $0x99] sm:$0xff] %vm443, %v519
          %551 = vst.msk [vmem:[%s536 + $0xa9] sm:$0xff] %vm443, %v520
          %552 = vst.msk [vmem:[%s536 + $0xb1] sm:$0xff] %vm443, %v521
          %553 = vst.msk [vmem:[%s536 + $0xc1] sm:$0xff] %vm443, %v522
          %554 = vst.msk [vmem:[%s536 + $0xc9] sm:$0xff] %vm443, %v523
          %555 = vst.msk [vmem:[%s536 + $0xd9] sm:$0xff] %vm443, %v524
          %556 = vst.msk [vmem:[%s536 + $0xe1] sm:$0xff] %vm443, %v525
          %557 = vst.msk [vmem:[%s536 + $0xf1] sm:$0xff] %vm443, %v526
          %558 = vst.msk [vmem:[%s536 + $0xf9] sm:$0xff] %vm443, %v527
          %559 = vst.msk [vmem:[%s536 + $0x109] sm:$0xff] %vm443, %v528
          %560 = vst.msk [vmem:[%s536 + $0x111] sm:$0xff] %vm443, %v529
          %561 = vst.msk [vmem:[%s536 + $0x121] sm:$0xff] %vm443, %v530
          %562 = vst.msk [vmem:[%s536 + $0x129] sm:$0xff] %vm443, %v531
          %563 = vst.msk [vmem:[%s536 + $0x139] sm:$0xff] %vm443, %v532
          %564 = vst.msk [vmem:[%s536 + $0x141] sm:$0xff] %vm443, %v533
          %565 = vst.msk [vmem:[%s536 + $0x151] sm:$0xff] %vm443, %v534
          %566 = vst.msk [vmem:[%s536 + $0x159] sm:$0xff] %vm443, %v535
        $region40: #{tpu_custom_call.1} parent=35 // pred_fallthru
          _
        %p567 = scmp.eq.s32.totalorder %s22, 1
        // Predicated region
        $region41: #{tpu_custom_call.1} parent=35 // pred_check
          %p568 = pneg %p567
        $region42: #{tpu_custom_call.1} parent=35 // pred_check_branch
          %570 = sbr.rel (%p568) target = $region44
        $region43: #{tpu_custom_call.1} parent=35 // pred_region
          %v571 = vld [vmem:[%s349] sm:$0xff]
          %v572 = vld [vmem:[%s349 + $0x8] sm:$0xff]
          %v574 = vlaneseq
          %v575 = vshrl.u32 %v574, 7
          %v576 = vsub.s32 0, %v575
          %v577 = vrot.slane %v380, %v576
          %v579 = vmul.f32 %v571, %v577
          %v580 = vmul.f32 %v572, %v577
          %v582 = vlaneseq
          %v583 = vshrl.u32 %v582, 7
          %v584 = vsub.s32 0, %v583
          %v585 = vrot.slane %v381, %v584
          %v587 = vadd.f32 %v579, %v585
          %v588 = vadd.f32 %v580, %v585
          %vm589 = vcmask 31744
          %590 = vst.msk [vmem:[%s325 + $0x1] sm:$0xff] %vm589, %v587
          %591 = vst.msk [vmem:[%s325 + $0x9] sm:$0xff] %vm589, %v588
          %s592 = scalar_lea.vmem %s325, 24 [#allocation2]
          %593 = vst.msk [vmem:[%s592 + $0x1] sm:$0xff] %vm589, %v585
          %594 = vst.msk [vmem:[%s592 + $0x9] sm:$0xff] %vm589, %v585
        $region44: #{tpu_custom_call.1} parent=35 // pred_fallthru
          _
        %s595 = sand.u32 %s174, 1
        %s596 = sand.u32 %s174, 1
        %s597 = smul.addr %s596, 384
        %s598 = scalar_lea.vmem [#allocation2], %s597
        // Predicated region
        $region45: #{tpu_custom_call.1} parent=35 // pred_check
          %p599 = pneg %p184
        $region46: #{tpu_custom_call.1} parent=35 // pred_check_branch
          %601 = sbr.rel (%p599) target = $region48
        $region47: #{tpu_custom_call.1} parent=35 // pred_region
          %s602 = smul.u32 16, %s22
          %s603 = ssub.s32 18, %s602
          %p604 = scmp.lt.s32.totalorder %s603, 16
          %s605 = scalar_select %p604, %s603, 16
          %s606 = smul.u32 128, %s605
          %s607 = smul.u32 %s606, 3
          %p608 = scmp.ne.s32.totalorder 0, %s607
          %s609 = smul.addr %s602, 3
          %s610 = sadd.s32 %s21, %s609
          %s611 = smul.addr %s20, 54
          %s612 = sadd.s32 %s610, %s611
          %s613 = smul.addr %s612, 8
          %s614 = scalar_lea.vmem %s4, %s613
          %s615 = smul.u32 %s605, 3
          // Predicated region
          $region49: #{tpu_custom_call.1} parent=47 // pred_check
            %p616 = pneg %p608
          $region50: #{tpu_custom_call.1} parent=47 // pred_check_branch
            %618 = sbr.rel (%p616) target = $region52
          $region51: #{tpu_custom_call.1} parent=47 // pred_region
            // Predicated region
            $region53: #{tpu_custom_call.1} parent=51 // pred_check
              _
            $region54: #{tpu_custom_call.1} parent=51 // pred_check_branch
              %620 = sbr.rel (0) target = $region56
            $region55: #{tpu_custom_call.1} parent=51 // pred_region
              // Predicated region
              $region75: #{tpu_custom_call.1} parent=55 // pred_check
                _
              $region76: #{tpu_custom_call.1} parent=55 // pred_check_branch
                %765 = sbr.rel (0) target = $region78
              $region77: #{tpu_custom_call.1} parent=55 // pred_region
                %s766 = sdiv.u32.pop %s615, 48
                %s767 = srem.u32.pop %s615, 48
                // While loop
                $region79: #{tpu_custom_call.1} parent=77 // loop_pre_header
                  _
                $region80: #{tpu_custom_call.1} parent=77 // loop_header
                  %s769 = sphi 0, %s771
                  %p770 = scmp.ge.s32.totalorder %s769, %s766
                  %s774 = sphi 0, %s875
                  %s775 = sphi %s598, %s878
                  %s776 = sphi %s614, %s879
                $region81: #{tpu_custom_call.1} parent=77 // loop_header_branch
                  %773 = sbr.rel (%p770) target = $region85
                $region82: #{tpu_custom_call.1} parent=77 // loop_body
                  %v777 = vld [vmem:[%s775] sm:$0xff]
                  %778 = vst [vmem:[%s776] sm:$0xff] %v777
                  %v779 = vld [vmem:[%s775 + $0x8] sm:$0xff]
                  %780 = vst [vmem:[%s776 + $0x8] sm:$0xff] %v779
                  %v781 = vld [vmem:[%s775 + $0x10] sm:$0xff]
                  %782 = vst [vmem:[%s776 + $0x10] sm:$0xff] %v781
                  %v783 = vld [vmem:[%s775 + $0x18] sm:$0xff]
                  %784 = vst [vmem:[%s776 + $0x18] sm:$0xff] %v783
                  %v785 = vld [vmem:[%s775 + $0x20] sm:$0xff]
                  %786 = vst [vmem:[%s776 + $0x20] sm:$0xff] %v785
                  %v787 = vld [vmem:[%s775 + $0x28] sm:$0xff]
                  %788 = vst [vmem:[%s776 + $0x28] sm:$0xff] %v787
                  %v789 = vld [vmem:[%s775 + $0x30] sm:$0xff]
                  %790 = vst [vmem:[%s776 + $0x30] sm:$0xff] %v789
                  %v791 = vld [vmem:[%s775 + $0x38] sm:$0xff]
                  %792 = vst [vmem:[%s776 + $0x38] sm:$0xff] %v791
                  %v793 = vld [vmem:[%s775 + $0x40] sm:$0xff]
                  %794 = vst [vmem:[%s776 + $0x40] sm:$0xff] %v793
                  %v795 = vld [vmem:[%s775 + $0x48] sm:$0xff]
                  %796 = vst [vmem:[%s776 + $0x48] sm:$0xff] %v795
                  %v797 = vld [vmem:[%s775 + $0x50] sm:$0xff]
                  %798 = vst [vmem:[%s776 + $0x50] sm:$0xff] %v797
                  %v799 = vld [vmem:[%s775 + $0x58] sm:$0xff]
                  %800 = vst [vmem:[%s776 + $0x58] sm:$0xff] %v799
                  %v801 = vld [vmem:[%s775 + $0x60] sm:$0xff]
                  %802 = vst [vmem:[%s776 + $0x60] sm:$0xff] %v801
                  %v803 = vld [vmem:[%s775 + $0x68] sm:$0xff]
                  %804 = vst [vmem:[%s776 + $0x68] sm:$0xff] %v803
                  %v805 = vld [vmem:[%s775 + $0x70] sm:$0xff]
                  %806 = vst [vmem:[%s776 + $0x70] sm:$0xff] %v805
                  %v807 = vld [vmem:[%s775 + $0x78] sm:$0xff]
                  %808 = vst [vmem:[%s776 + $0x78] sm:$0xff] %v807
                  %v809 = vld [vmem:[%s775 + $0x80] sm:$0xff]
                  %810 = vst [vmem:[%s776 + $0x80] sm:$0xff] %v809
                  %v811 = vld [vmem:[%s775 + $0x88] sm:$0xff]
                  %812 = vst [vmem:[%s776 + $0x88] sm:$0xff] %v811
                  %v813 = vld [vmem:[%s775 + $0x90] sm:$0xff]
                  %814 = vst [vmem:[%s776 + $0x90] sm:$0xff] %v813
                  %v815 = vld [vmem:[%s775 + $0x98] sm:$0xff]
                  %816 = vst [vmem:[%s776 + $0x98] sm:$0xff] %v815
                  %v817 = vld [vmem:[%s775 + $0xa0] sm:$0xff]
                  %818 = vst [vmem:[%s776 + $0xa0] sm:$0xff] %v817
                  %v819 = vld [vmem:[%s775 + $0xa8] sm:$0xff]
                  %820 = vst [vmem:[%s776 + $0xa8] sm:$0xff] %v819
                  %v821 = vld [vmem:[%s775 + $0xb0] sm:$0xff]
                  %822 = vst [vmem:[%s776 + $0xb0] sm:$0xff] %v821
                  %v823 = vld [vmem:[%s775 + $0xb8] sm:$0xff]
                  %824 = vst [vmem:[%s776 + $0xb8] sm:$0xff] %v823
                  %v825 = vld [vmem:[%s775 + $0xc0] sm:$0xff]
                  %826 = vst [vmem:[%s776 + $0xc0] sm:$0xff] %v825
                  %v827 = vld [vmem:[%s775 + $0xc8] sm:$0xff]
                  %828 = vst [vmem:[%s776 + $0xc8] sm:$0xff] %v827
                  %v829 = vld [vmem:[%s775 + $0xd0] sm:$0xff]
                  %830 = vst [vmem:[%s776 + $0xd0] sm:$0xff] %v829
                  %v831 = vld [vmem:[%s775 + $0xd8] sm:$0xff]
                  %832 = vst [vmem:[%s776 + $0xd8] sm:$0xff] %v831
                  %v833 = vld [vmem:[%s775 + $0xe0] sm:$0xff]
                  %834 = vst [vmem:[%s776 + $0xe0] sm:$0xff] %v833
                  %v835 = vld [vmem:[%s775 + $0xe8] sm:$0xff]
                  %836 = vst [vmem:[%s776 + $0xe8] sm:$0xff] %v835
                  %v837 = vld [vmem:[%s775 + $0xf0] sm:$0xff]
                  %838 = vst [vmem:[%s776 + $0xf0] sm:$0xff] %v837
                  %v839 = vld [vmem:[%s775 + $0xf8] sm:$0xff]
                  %840 = vst [vmem:[%s776 + $0xf8] sm:$0xff] %v839
                  %v841 = vld [vmem:[%s775 + $0x100] sm:$0xff]
                  %842 = vst [vmem:[%s776 + $0x100] sm:$0xff] %v841
                  %v843 = vld [vmem:[%s775 + $0x108] sm:$0xff]
                  %844 = vst [vmem:[%s776 + $0x108] sm:$0xff] %v843
                  %v845 = vld [vmem:[%s775 + $0x110] sm:$0xff]
                  %846 = vst [vmem:[%s776 + $0x110] sm:$0xff] %v845
                  %v847 = vld [vmem:[%s775 + $0x118] sm:$0xff]
                  %848 = vst [vmem:[%s776 + $0x118] sm:$0xff] %v847
                  %v849 = vld [vmem:[%s775 + $0x120] sm:$0xff]
                  %850 = vst [vmem:[%s776 + $0x120] sm:$0xff] %v849
                  %v851 = vld [vmem:[%s775 + $0x128] sm:$0xff]
                  %852 = vst [vmem:[%s776 + $0x128] sm:$0xff] %v851
                  %v853 = vld [vmem:[%s775 + $0x130] sm:$0xff]
                  %854 = vst [vmem:[%s776 + $0x130] sm:$0xff] %v853
                  %v855 = vld [vmem:[%s775 + $0x138] sm:$0xff]
                  %856 = vst [vmem:[%s776 + $0x138] sm:$0xff] %v855
                  %v857 = vld [vmem:[%s775 + $0x140] sm:$0xff]
                  %858 = vst [vmem:[%s776 + $0x140] sm:$0xff] %v857
                  %v859 = vld [vmem:[%s775 + $0x148] sm:$0xff]
                  %860 = vst [vmem:[%s776 + $0x148] sm:$0xff] %v859
                  %v861 = vld [vmem:[%s775 + $0x150] sm:$0xff]
                  %862 = vst [vmem:[%s776 + $0x150] sm:$0xff] %v861
                  %v863 = vld [vmem:[%s775 + $0x158] sm:$0xff]
                  %864 = vst [vmem:[%s776 + $0x158] sm:$0xff] %v863
                  %v865 = vld [vmem:[%s775 + $0x160] sm:$0xff]
                  %866 = vst [vmem:[%s776 + $0x160] sm:$0xff] %v865
                  %v867 = vld [vmem:[%s775 + $0x168] sm:$0xff]
                  %868 = vst [vmem:[%s776 + $0x168] sm:$0xff] %v867
                  %v869 = vld [vmem:[%s775 + $0x170] sm:$0xff]
                  %870 = vst [vmem:[%s776 + $0x170] sm:$0xff] %v869
                  %v871 = vld [vmem:[%s775 + $0x178] sm:$0xff]
                  %872 = vst [vmem:[%s776 + $0x178] sm:$0xff] %v871
                  %s873 = sadd.s32 1, %s774
                  %p874 = scmp.ge.s32.totalorder %s873, %s766
                  %s875 = scalar_select %p874, 0, %s873
                  %s876 = smul.u32 %s875, 384
                  %s877 = smul.u32 %s875, 384
                  %s878 = scalar_lea.vmem %s598, %s876 [#allocation2]
                  %s879 = scalar_lea.vmem %s614, %s877
                $region83: #{tpu_custom_call.1} parent=77 // loop_footer
                  %s771 = sadd.s32 %s769, 1
                $region84: #{tpu_custom_call.1} parent=77 // loop_footer_branch
                  %768 = sbr.rel target = $region80
                $region85: #{tpu_custom_call.1} parent=77 // loop_exit
                  _
                %s880 = sdiv.u32.pop %s615, 48
                %s881 = srem.u32.pop %s615, 48
                %s882 = smul.u32 %s880, 48
                %s883 = smul.u32 8, %s882
                %s884 = scalar_lea.vmem %s598, %s883 [#allocation2]
                %s885 = smul.u32 8, %s882
                %s886 = scalar_lea.vmem %s614, %s885
                // While loop
                $region86: #{tpu_custom_call.1} parent=77 // loop_pre_header
                  _
                $region87: #{tpu_custom_call.1} parent=77 // loop_header
                  %s888 = sphi 0, %s890
                  %p889 = scmp.ge.s32.totalorder %s888, %s881
                  %s893 = sphi 0, %s900
                  %s894 = sphi %s884, %s903
                  %s895 = sphi %s886, %s904
                $region88: #{tpu_custom_call.1} parent=77 // loop_header_branch
                  %892 = sbr.rel (%p889) target = $region92
                $region89: #{tpu_custom_call.1} parent=77 // loop_body
                  %v896 = vld [vmem:[%s894] sm:$0xff]
                  %897 = vst [vmem:[%s895] sm:$0xff] %v896
                  %s898 = sadd.s32 1, %s893
                  %p899 = scmp.ge.s32.totalorder %s898, %s881
                  %s900 = scalar_select %p899, 0, %s898
                  %s901 = smul.u32 %s900, 8
                  %s902 = smul.u32 %s900, 8
                  %s903 = scalar_lea.vmem %s884, %s901 [#allocation2]
                  %s904 = scalar_lea.vmem %s886, %s902
                $region90: #{tpu_custom_call.1} parent=77 // loop_footer
                  %s890 = sadd.s32 %s888, 1
                $region91: #{tpu_custom_call.1} parent=77 // loop_footer_branch
                  %887 = sbr.rel target = $region87
                $region92: #{tpu_custom_call.1} parent=77 // loop_exit
                  _
              $region78: #{tpu_custom_call.1} parent=55 // pred_fallthru
                _
              // Predicated region
              $region93: #{tpu_custom_call.1} parent=55 // pred_check
                _
              $region94: #{tpu_custom_call.1} parent=55 // pred_check_branch
                %906 = sbr.rel target = $region96
              $region95: #{tpu_custom_call.1} parent=55 // pred_region
                _
              $region96: #{tpu_custom_call.1} parent=55 // pred_fallthru
                _
            $region56: #{tpu_custom_call.1} parent=51 // pred_fallthru
              _
            // Predicated region
            $region57: #{tpu_custom_call.1} parent=51 // pred_check
              _
            $region58: #{tpu_custom_call.1} parent=51 // pred_check_branch
              %622 = sbr.rel target = $region60
            $region59: #{tpu_custom_call.1} parent=51 // pred_region
              %s624 = ssub.s32 256, 1
              %s625 = sdiv.u32.pop %s615, 48
              %s626 = srem.u32.pop %s615, 48
              // While loop
              $region61: #{tpu_custom_call.1} parent=59 // loop_pre_header
                _
              $region62: #{tpu_custom_call.1} parent=59 // loop_header
                %s628 = sphi 0, %s630
                %p629 = scmp.ge.s32.totalorder %s628, %s625
                %s633 = sphi 0, %s734
                %s634 = sphi %s598, %s737
                %s635 = sphi %s614, %s738
              $region63: #{tpu_custom_call.1} parent=59 // loop_header_branch
                %632 = sbr.rel (%p629) target = $region67
              $region64: #{tpu_custom_call.1} parent=59 // loop_body
                %v636 = vld [vmem:[%s634] sm:%s624]
                %637 = vst [vmem:[%s635] sm:%s624] %v636
                %v638 = vld [vmem:[%s634 + $0x8] sm:%s624]
                %639 = vst [vmem:[%s635 + $0x8] sm:%s624] %v638
                %v640 = vld [vmem:[%s634 + $0x10] sm:%s624]
                %641 = vst [vmem:[%s635 + $0x10] sm:%s624] %v640
                %v642 = vld [vmem:[%s634 + $0x18] sm:%s624]
                %643 = vst [vmem:[%s635 + $0x18] sm:%s624] %v642
                %v644 = vld [vmem:[%s634 + $0x20] sm:%s624]
                %645 = vst [vmem:[%s635 + $0x20] sm:%s624] %v644
                %v646 = vld [vmem:[%s634 + $0x28] sm:%s624]
                %647 = vst [vmem:[%s635 + $0x28] sm:%s624] %v646
                %v648 = vld [vmem:[%s634 + $0x30] sm:%s624]
                %649 = vst [vmem:[%s635 + $0x30] sm:%s624] %v648
                %v650 = vld [vmem:[%s634 + $0x38] sm:%s624]
                %651 = vst [vmem:[%s635 + $0x38] sm:%s624] %v650
                %v652 = vld [vmem:[%s634 + $0x40] sm:%s624]
                %653 = vst [vmem:[%s635 + $0x40] sm:%s624] %v652
                %v654 = vld [vmem:[%s634 + $0x48] sm:%s624]
                %655 = vst [vmem:[%s635 + $0x48] sm:%s624] %v654
                %v656 = vld [vmem:[%s634 + $0x50] sm:%s624]
                %657 = vst [vmem:[%s635 + $0x50] sm:%s624] %v656
                %v658 = vld [vmem:[%s634 + $0x58] sm:%s624]
                %659 = vst [vmem:[%s635 + $0x58] sm:%s624] %v658
                %v660 = vld [vmem:[%s634 + $0x60] sm:%s624]
                %661 = vst [vmem:[%s635 + $0x60] sm:%s624] %v660
                %v662 = vld [vmem:[%s634 + $0x68] sm:%s624]
                %663 = vst [vmem:[%s635 + $0x68] sm:%s624] %v662
                %v664 = vld [vmem:[%s634 + $0x70] sm:%s624]
                %665 = vst [vmem:[%s635 + $0x70] sm:%s624] %v664
                %v666 = vld [vmem:[%s634 + $0x78] sm:%s624]
                %667 = vst [vmem:[%s635 + $0x78] sm:%s624] %v666
                %v668 = vld [vmem:[%s634 + $0x80] sm:%s624]
                %669 = vst [vmem:[%s635 + $0x80] sm:%s624] %v668
                %v670 = vld [vmem:[%s634 + $0x88] sm:%s624]
                %671 = vst [vmem:[%s635 + $0x88] sm:%s624] %v670
                %v672 = vld [vmem:[%s634 + $0x90] sm:%s624]
                %673 = vst [vmem:[%s635 + $0x90] sm:%s624] %v672
                %v674 = vld [vmem:[%s634 + $0x98] sm:%s624]
                %675 = vst [vmem:[%s635 + $0x98] sm:%s624] %v674
                %v676 = vld [vmem:[%s634 + $0xa0] sm:%s624]
                %677 = vst [vmem:[%s635 + $0xa0] sm:%s624] %v676
                %v678 = vld [vmem:[%s634 + $0xa8] sm:%s624]
                %679 = vst [vmem:[%s635 + $0xa8] sm:%s624] %v678
                %v680 = vld [vmem:[%s634 + $0xb0] sm:%s624]
                %681 = vst [vmem:[%s635 + $0xb0] sm:%s624] %v680
                %v682 = vld [vmem:[%s634 + $0xb8] sm:%s624]
                %683 = vst [vmem:[%s635 + $0xb8] sm:%s624] %v682
                %v684 = vld [vmem:[%s634 + $0xc0] sm:%s624]
                %685 = vst [vmem:[%s635 + $0xc0] sm:%s624] %v684
                %v686 = vld [vmem:[%s634 + $0xc8] sm:%s624]
                %687 = vst [vmem:[%s635 + $0xc8] sm:%s624] %v686
                %v688 = vld [vmem:[%s634 + $0xd0] sm:%s624]
                %689 = vst [vmem:[%s635 + $0xd0] sm:%s624] %v688
                %v690 = vld [vmem:[%s634 + $0xd8] sm:%s624]
                %691 = vst [vmem:[%s635 + $0xd8] sm:%s624] %v690
                %v692 = vld [vmem:[%s634 + $0xe0] sm:%s624]
                %693 = vst [vmem:[%s635 + $0xe0] sm:%s624] %v692
                %v694 = vld [vmem:[%s634 + $0xe8] sm:%s624]
                %695 = vst [vmem:[%s635 + $0xe8] sm:%s624] %v694
                %v696 = vld [vmem:[%s634 + $0xf0] sm:%s624]
                %697 = vst [vmem:[%s635 + $0xf0] sm:%s624] %v696
                %v698 = vld [vmem:[%s634 + $0xf8] sm:%s624]
                %699 = vst [vmem:[%s635 + $0xf8] sm:%s624] %v698
                %v700 = vld [vmem:[%s634 + $0x100] sm:%s624]
                %701 = vst [vmem:[%s635 + $0x100] sm:%s624] %v700
                %v702 = vld [vmem:[%s634 + $0x108] sm:%s624]
                %703 = vst [vmem:[%s635 + $0x108] sm:%s624] %v702
                %v704 = vld [vmem:[%s634 + $0x110] sm:%s624]
                %705 = vst [vmem:[%s635 + $0x110] sm:%s624] %v704
                %v706 = vld [vmem:[%s634 + $0x118] sm:%s624]
                %707 = vst [vmem:[%s635 + $0x118] sm:%s624] %v706
                %v708 = vld [vmem:[%s634 + $0x120] sm:%s624]
                %709 = vst [vmem:[%s635 + $0x120] sm:%s624] %v708
                %v710 = vld [vmem:[%s634 + $0x128] sm:%s624]
                %711 = vst [vmem:[%s635 + $0x128] sm:%s624] %v710
                %v712 = vld [vmem:[%s634 + $0x130] sm:%s624]
                %713 = vst [vmem:[%s635 + $0x130] sm:%s624] %v712
                %v714 = vld [vmem:[%s634 + $0x138] sm:%s624]
                %715 = vst [vmem:[%s635 + $0x138] sm:%s624] %v714
                %v716 = vld [vmem:[%s634 + $0x140] sm:%s624]
                %717 = vst [vmem:[%s635 + $0x140] sm:%s624] %v716
                %v718 = vld [vmem:[%s634 + $0x148] sm:%s624]
                %719 = vst [vmem:[%s635 + $0x148] sm:%s624] %v718
                %v720 = vld [vmem:[%s634 + $0x150] sm:%s624]
                %721 = vst [vmem:[%s635 + $0x150] sm:%s624] %v720
                %v722 = vld [vmem:[%s634 + $0x158] sm:%s624]
                %723 = vst [vmem:[%s635 + $0x158] sm:%s624] %v722
                %v724 = vld [vmem:[%s634 + $0x160] sm:%s624]
                %725 = vst [vmem:[%s635 + $0x160] sm:%s624] %v724
                %v726 = vld [vmem:[%s634 + $0x168] sm:%s624]
                %727 = vst [vmem:[%s635 + $0x168] sm:%s624] %v726
                %v728 = vld [vmem:[%s634 + $0x170] sm:%s624]
                %729 = vst [vmem:[%s635 + $0x170] sm:%s624] %v728
                %v730 = vld [vmem:[%s634 + $0x178] sm:%s624]
                %731 = vst [vmem:[%s635 + $0x178] sm:%s624] %v730
                %s732 = sadd.s32 1, %s633
                %p733 = scmp.ge.s32.totalorder %s732, %s625
                %s734 = scalar_select %p733, 0, %s732
                %s735 = smul.u32 %s734, 384
                %s736 = smul.u32 %s734, 384
                %s737 = scalar_lea.vmem %s598, %s735 [#allocation2]
                %s738 = scalar_lea.vmem %s614, %s736
              $region65: #{tpu_custom_call.1} parent=59 // loop_footer
                %s630 = sadd.s32 %s628, 1
              $region66: #{tpu_custom_call.1} parent=59 // loop_footer_branch
                %627 = sbr.rel target = $region62
              $region67: #{tpu_custom_call.1} parent=59 // loop_exit
                _
              %s739 = sdiv.u32.pop %s615, 48
              %s740 = srem.u32.pop %s615, 48
              %s741 = smul.u32 %s739, 48
              %s742 = smul.u32 8, %s741
              %s743 = scalar_lea.vmem %s598, %s742 [#allocation2]
              %s744 = smul.u32 8, %s741
              %s745 = scalar_lea.vmem %s614, %s744
              // While loop
              $region68: #{tpu_custom_call.1} parent=59 // loop_pre_header
                _
              $region69: #{tpu_custom_call.1} parent=59 // loop_header
                %s747 = sphi 0, %s749
                %p748 = scmp.ge.s32.totalorder %s747, %s740
                %s752 = sphi 0, %s759
                %s753 = sphi %s743, %s762
                %s754 = sphi %s745, %s763
              $region70: #{tpu_custom_call.1} parent=59 // loop_header_branch
                %751 = sbr.rel (%p748) target = $region74
              $region71: #{tpu_custom_call.1} parent=59 // loop_body
                %v755 = vld [vmem:[%s753] sm:%s624]
                %756 = vst [vmem:[%s754] sm:%s624] %v755
                %s757 = sadd.s32 1, %s752
                %p758 = scmp.ge.s32.totalorder %s757, %s740
                %s759 = scalar_select %p758, 0, %s757
                %s760 = smul.u32 %s759, 8
                %s761 = smul.u32 %s759, 8
                %s762 = scalar_lea.vmem %s743, %s760 [#allocation2]
                %s763 = scalar_lea.vmem %s745, %s761
              $region72: #{tpu_custom_call.1} parent=59 // loop_footer
                %s749 = sadd.s32 %s747, 1
              $region73: #{tpu_custom_call.1} parent=59 // loop_footer_branch
                %746 = sbr.rel target = $region69
              $region74: #{tpu_custom_call.1} parent=59 // loop_exit
                _
            $region60: #{tpu_custom_call.1} parent=51 // pred_fallthru
              _
          $region52: #{tpu_custom_call.1} parent=47 // pred_fallthru
            _
          %907 = vnop
        $region48: #{tpu_custom_call.1} parent=35 // pred_fallthru
          _
      $region36: #{tpu_custom_call.1} parent=5 // pred_fallthru
        _
      %p908 = scmp.le.s32.totalorder 2, %s10
      // Predicated region
      $region97: #{tpu_custom_call.1} parent=5 // pred_check
        %p909 = pneg %p908
      $region98: #{tpu_custom_call.1} parent=5 // pred_check_branch
        %911 = sbr.rel (%p909) target = $region100
      $region99: #{tpu_custom_call.1} parent=5 // pred_region
        %s912 = ssub.s32 %s10, 2
        // Predicated region
        $region101: #{tpu_custom_call.1} parent=99 // pred_check
          %p913 = pneg %p190
        $region102: #{tpu_custom_call.1} parent=99 // pred_check_branch
          %915 = sbr.rel (%p913) target = $region104
        $region103: #{tpu_custom_call.1} parent=99 // pred_region
          %s916 = sand.u32 %s175, 1
          %s917 = sand.u32 %s175, 1
          %s918 = smul.addr %s917, 384
          %s919 = scalar_lea.vmem [#allocation2], %s918
        $region104: #{tpu_custom_call.1} parent=99 // pred_fallthru
          _
      $region100: #{tpu_custom_call.1} parent=5 // pred_fallthru
        _
    $region6: #{tpu_custom_call.1} parent=1 // loop_footer
      %s14 = sadd.s32 1, %s10
    $region7: #{tpu_custom_call.1} parent=1 // loop_footer_branch
      %9 = sbr.rel target = $region3
    $region8: #{tpu_custom_call.1} parent=1 // loop_exit
      _

</llo_original>
